<compile_context>
chip_gen: v7x
topology: tpu7x:2x2x1
jax: 0.10.0
libtpu: 0.0.40
codegen_flags: <defaults>
</compile_context>

<pallas_src>
import jax
import jax.numpy as jnp
from jax.experimental import pallas as pl
from jax.experimental.pallas import tpu as pltpu

BN_EPS = 1e-5
LANE = 128          # feature (lane) padding granularity
ROW_ALIGN = 16      # bf16 packs 16 rows per vreg -> batch-tile granularity
MAX_TILE_M = 512    # >=512-row tiles reach ~85% of HBM roofline


def _round_up(x, m):
    return (x + m - 1) // m * m


def _cdiv(a, b):
    return -(-a // b)


def _vmem_limit_bytes():
    cap = 64 * 1024 * 1024                      # conservative fallback (v7x)
    try:
        cap = int(getattr(pltpu.get_tpu_info(), "vmem_capacity_bytes", cap))
    except Exception:
        pass
    return (cap * 3) // 4                       # ~75% of physical VMEM


def _choose_tile_m(n, widths, budget_bytes):
    """Largest batch tile (multiple of ROW_ALIGN, <= MAX_TILE_M) whose per-layer
    live set (double-buffered in/out activation tiles + resident bf16 weights)
    fits the budget.  Live set is a max over layers, not a sum over all layers."""
    tm = min(MAX_TILE_M, _round_up(max(n, 1), ROW_ALIGN))
    while tm > ROW_ALIGN:
        need = 0
        for w_in, w_out in zip(widths[:-1], widths[1:]):
            layer = (2 * tm * w_in * 4        # input activation tile (f32), 2x buffered
                     + 2 * tm * w_out * 4     # output activation tile (f32), 2x buffered
                     + w_in * w_out * 2)      # resident bf16 weights
            need = max(need, layer)
        if need <= budget_bytes:
            break
        tm = max(ROW_ALIGN, _round_up(tm // 2, ROW_ALIGN))
    return tm


# ----------------------------------------------------------------------------
# In-kernel helpers and kernels
# ----------------------------------------------------------------------------
def _tile_bn_stats(y, tile_idx, tile_m, true_n):
    """Per-tile BN partial statistics with padded/garbage-row masking.

    Returns (1, 2, H): row 0 = masked column sums, row 1 = column sums of
    squares centered at the tile mean (stable; combined across tiles on the
    host with Chan's parallel-variance formula)."""
    row = jax.lax.broadcasted_iota(jnp.int32, (tile_m, 1), 0) + tile_idx * tile_m
    mask = row < true_n
    y_m = jnp.where(mask, y, 0.0)
    col_sum = jnp.sum(y_m, axis=0, keepdims=True)                      # (1, H)
    cnt = jnp.maximum(jnp.minimum(tile_m, true_n - tile_idx * tile_m), 1)
    tile_mean = col_sum * (1.0 / cnt.astype(jnp.float32))
    d = jnp.where(mask, y - tile_mean, 0.0)
    col_m2 = jnp.sum(d * d, axis=0, keepdims=True)                     # (1, H)
    return jnp.concatenate([col_sum, col_m2], axis=0).reshape(1, 2, -1)


def _make_first_kernel(tile_m, true_n):
    def kernel(x_ref, w_ref, y_ref, st_ref):
        i = pl.program_id(0)
        x = x_ref[...].astype(jnp.bfloat16)          # in-kernel cast, no wrapper pass
        y = jnp.dot(x, w_ref[...], preferred_element_type=jnp.float32)
        y_ref[...] = y
        st_ref[...] = _tile_bn_stats(y, i, tile_m, true_n)
    return kernel


def _make_mid_kernel(tile_m, true_n):
    def kernel(yp_ref, scale_ref, shift_ref, w_ref, y_ref, st_ref):
        i = pl.program_id(0)
        # Fused BN-normalize (folded scale/shift) + ReLU epilogue of the previous
        # layer, then this layer's matmul + partial stats.
        h = jnp.maximum(yp_ref[...] * scale_ref[...] + shift_ref[...], 0.0)
        h = h.astype(jnp.bfloat16)
        y = jnp.dot(h, w_ref[...], preferred_element_type=jnp.float32)
        y_ref[...] = y
        st_ref[...] = _tile_bn_stats(y, i, tile_m, true_n)
    return kernel


def _last_kernel(yp_ref, scale_ref, shift_ref, w_ref, b_ref, o_ref):
    h = jnp.maximum(yp_ref[...] * scale_ref[...] + shift_ref[...], 0.0)
    h = h.astype(jnp.bfloat16)
    o_ref[...] = jnp.dot(h, w_ref[...], preferred_element_type=jnp.float32) + b_ref[...]


# ----------------------------------------------------------------------------
# Host-side (tiny) stats combination
# ----------------------------------------------------------------------------
def _combine_bn_stats(stats, counts, n):
    """Chan et al. parallel combination of per-tile (sum, tile-centered M2)."""
    col_sum = stats[:, 0, :]                                   # (T, H)
    col_m2 = stats[:, 1, :]                                    # (T, H)
    mean = jnp.sum(col_sum, axis=0) / n                        # (H,)
    tile_mean = col_sum / counts[:, None]
    m2 = jnp.sum(col_m2 + counts[:, None] * jnp.square(tile_mean - mean[None, :]),
                 axis=0)
    var = jnp.maximum(m2 / n, 0.0)
    return mean, var


# ----------------------------------------------------------------------------
# Parameters (PyTorch-equivalent init)
# ----------------------------------------------------------------------------
def init_mlp_params(key, in_feats, n_classes, n_layers, n_hidden):
    """nn.Linear-style uniform(-1/sqrt(fan_in)) init; BN gamma=1, beta=0."""
    params = []
    for i in range(n_layers):
        in_h = n_hidden if i > 0 else in_feats
        out_h = n_hidden if i < n_layers - 1 else n_classes
        key, kw, kb = jax.random.split(key, 3)
        bound = float(in_h) ** -0.5
        layer = {
            "w": jax.random.uniform(kw, (out_h, in_h), jnp.float32, -bound, bound),
            "b": jax.random.uniform(kb, (out_h,), jnp.float32, -bound, bound),
        }
        if i < n_layers - 1:
            layer["gamma"] = jnp.ones((out_h,), jnp.float32)
            layer["beta"] = jnp.zeros((out_h,), jnp.float32)
        params.append(layer)
    return params


# ----------------------------------------------------------------------------
# Forward builder
# ----------------------------------------------------------------------------
def make_mlp_forward(params):
    n_layers = len(params)
    assert n_layers >= 2  # TODO(synk): trivial single-Linear path not wired up
    in_feats = params[0]["w"].shape[1]
    n_classes = params[-1]["w"].shape[0]

    # Layer output widths padded to full 128-lane vregs (lane-dense matmuls and
    # unmasked stores).  Padded weight columns and gamma/beta entries are zero,
    # so padded activation columns stay exactly zero downstream.
    out_pads = [_round_up(p["w"].shape[0], LANE) for p in params]
    widths = [in_feats] + out_pads

    w_bf, gammas, betas = [], [], []
    for i, p in enumerate(params):
        out_h, in_h = p["w"].shape
        in_dim = in_feats if i == 0 else out_pads[i - 1]
        wt = jnp.zeros((in_dim, out_pads[i]), jnp.float32)
        wt = wt.at[:in_h, :out_h].set(p["w"].T)
        w_bf.append(wt.astype(jnp.bfloat16))
        if i < n_layers - 1:
            gammas.append(jnp.pad(p["gamma"], (0, out_pads[i] - out_h)))
            betas.append(jnp.pad(p["beta"], (0, out_pads[i] - out_h)))
    b_last = jnp.pad(params[-1]["b"], (0, out_pads[-1] - n_classes)).reshape(1, -1)

    vmem_limit = _vmem_limit_bytes()
    tile_budget = (vmem_limit * 3) // 4
    cparams = pltpu.CompilerParams(
        dimension_semantics=("parallel",),      # batch tiles -> both v7x TCs
        vmem_limit_bytes=vmem_limit)

    @jax.jit
    def forward(feat):
        n = feat.shape[0]
        tm = _choose_tile_m(n, widths, tile_budget)
        n_tiles = _cdiv(n, tm)
        n_rows = n_tiles * tm
        counts = jnp.asarray([min(tm, n - t * tm) for t in range(n_tiles)],
                             jnp.float32)

        # ---- layer 0: matmul + per-tile BN partial stats -------------------
        h_w = out_pads[0]
        y, st = pl.pallas_call(
            _make_first_kernel(tm, n),
            grid=(n_tiles,),
            in_specs=[
                pl.BlockSpec((tm, in_feats), lambda i: (i, 0)),
                pl.BlockSpec((in_feats, h_w), lambda i: (0, 0)),
            ],
            out_specs=[
                pl.BlockSpec((tm, h_w), lambda i: (i, 0)),
                pl.BlockSpec((1, 2, h_w), lambda i: (i, 0, 0)),
            ],
            out_shape=(
                jax.ShapeDtypeStruct((n_rows, h_w), jnp.float32),
                jax.ShapeDtypeStruct((n_tiles, 2, h_w), jnp.float32),
            ),
            compiler_params=cparams,
        )(feat, w_bf[0])

        out = None
        for li in range(1, n_layers):
            h_in, h_out = out_pads[li - 1], out_pads[li]
            # Tiny host-side combine of per-tile stats; fold BN affine.
            mean, var = _combine_bn_stats(st, counts, n)
            scale_v = gammas[li - 1] * jax.lax.rsqrt(var + BN_EPS)
            shift_v = betas[li - 1] - scale_v * mean
            scale = scale_v.reshape(1, h_in)
            shift = shift_v.reshape(1, h_in)

            if li < n_layers - 1:
                y, st = pl.pallas_call(
                    _make_mid_kernel(tm, n),
                    grid=(n_tiles,),
                    in_specs=[
                        pl.BlockSpec((tm, h_in), lambda i: (i, 0)),
                        pl.BlockSpec((1, h_in), lambda i: (0, 0)),
                        pl.BlockSpec((1, h_in), lambda i: (0, 0)),
                        pl.BlockSpec((h_in, h_out), lambda i: (0, 0)),
                    ],
                    out_specs=[
                        pl.BlockSpec((tm, h_out), lambda i: (i, 0)),
                        pl.BlockSpec((1, 2, h_out), lambda i: (i, 0, 0)),
                    ],
                    out_shape=(
                        jax.ShapeDtypeStruct((n_rows, h_out), jnp.float32),
                        jax.ShapeDtypeStruct((n_tiles, 2, h_out), jnp.float32),
                    ),
                    compiler_params=cparams,
                )(y, scale, shift, w_bf[li])
            else:
                out = pl.pallas_call(
                    _last_kernel,
                    grid=(n_tiles,),
                    in_specs=[
                        pl.BlockSpec((tm, h_in), lambda i: (i, 0)),
                        pl.BlockSpec((1, h_in), lambda i: (0, 0)),
                        pl.BlockSpec((1, h_in), lambda i: (0, 0)),
                        pl.BlockSpec((h_in, h_out), lambda i: (0, 0)),
                        pl.BlockSpec((1, h_out), lambda i: (0, 0)),
                    ],
                    out_specs=pl.BlockSpec((tm, h_out), lambda i: (i, 0)),
                    out_shape=jax.ShapeDtypeStruct((n_rows, h_out), jnp.float32),
                    compiler_params=cparams,
                )(y, scale, shift, w_bf[li], b_last)

        # Lane-dense padded output; slice valid rows/classes.
        return out[:n, :n_classes]

    return forward


# ----------------------------------------------------------------------------
# Pure-JAX f32 reference (mirrors the PyTorch module in train() mode)
# ----------------------------------------------------------------------------
def mlp_reference(feat, params):
    h = feat
    for i in range(len(params) - 1):
        p = params[i]
        y = h @ p["w"].T + p["b"]
        mean = jnp.mean(y, axis=0, keepdims=True)
        var = jnp.mean((y - mean) ** 2, axis=0, keepdims=True)
        y = (y - mean) * jax.lax.rsqrt(var + BN_EPS)
        y = p["gamma"] * y + p["beta"]
        h = jnp.maximum(y, 0.0)            # dropout(p=0.0) is the identity
    p = params[-1]
    return h @ p["w"].T + p["b"]


if __name__ == "__main__":
    in_feats, n_hidden, n_classes, n_layers = 16, 32, 8, 3
    batch = 16

    key = jax.random.PRNGKey(0)
    key, kx = jax.random.split(key)
    feat = jax.random.normal(kx, (batch, in_feats), jnp.float32)

    params = init_mlp_params(key, in_feats, n_classes, n_layers, n_hidden)
    forward = make_mlp_forward(params)

    out = forward(feat)
    jax.block_until_ready(out)
    assert out.shape == (batch, n_classes), out.shape

    ref = mlp_reference(feat, params)
    # bf16 matmul inputs vs f32 reference -> loose tolerance (benchmark parity).
    err = float(jnp.max(jnp.abs(out - ref)))
    assert jnp.allclose(out, ref, atol=1e-1, rtol=1e-1), f"max abs diff = {err}"
    print("KERNEL_OK")
</pallas_src>

<mosaic_0001>
module attributes {stable_mosaic.version = 11 : i64} {
  func.func @kernel(%arg0: i32, %arg1: memref<16x128xf32, #tpu.memory_space<vmem>>, %arg2: memref<1x128xf32, #tpu.memory_space<vmem>>, %arg3: memref<1x128xf32, #tpu.memory_space<vmem>>, %arg4: memref<128x128xbf16, #tpu.memory_space<vmem>>, %arg5: memref<16x128xf32, #tpu.memory_space<vmem>>, %arg6: memref<1x2x128xf32, #tpu.memory_space<vmem>>) attributes {dimension_semantics = [#tpu.dimension_semantics<parallel>], iteration_bounds = array<i64: 1>, scalar_prefetch = 0 : i64, scratch_operands = 0 : i64, tpu.core_type = #tpu.core_type<tc>, window_params = [{transform_indices = @transform_0, window_bounds = array<i64: 16, 128>}, {pipeline_mode = #tpu.pipeline_mode<synchronous>, transform_indices = @transform_1, window_bounds = array<i64: 1, 128>}, {pipeline_mode = #tpu.pipeline_mode<synchronous>, transform_indices = @transform_2, window_bounds = array<i64: 1, 128>}, {pipeline_mode = #tpu.pipeline_mode<synchronous>, transform_indices = @transform_3, window_bounds = array<i64: 128, 128>}, {transform_indices = @transform_4, window_bounds = array<i64: 16, 128>}, {transform_indices = @transform_5, window_bounds = array<i64: 1, 2, 128>}]} {
    %c0 = arith.constant 0 : index
    %c0_0 = arith.constant 0 : index
    %0 = vector.load %arg1[%c0, %c0_0] : memref<16x128xf32, #tpu.memory_space<vmem>>, vector<16x128xf32>
    %c0_1 = arith.constant 0 : index
    %c0_2 = arith.constant 0 : index
    %1 = vector.load %arg2[%c0_1, %c0_2] : memref<1x128xf32, #tpu.memory_space<vmem>>, vector<1x128xf32>
    %2 = vector.broadcast %1 : vector<1x128xf32> to vector<16x128xf32>
    %3 = arith.mulf %0, %2 : vector<16x128xf32>
    %c0_3 = arith.constant 0 : index
    %c0_4 = arith.constant 0 : index
    %4 = vector.load %arg3[%c0_3, %c0_4] : memref<1x128xf32, #tpu.memory_space<vmem>>, vector<1x128xf32>
    %5 = vector.broadcast %4 : vector<1x128xf32> to vector<16x128xf32>
    %6 = arith.addf %3, %5 : vector<16x128xf32>
    %cst = arith.constant 0.000000e+00 : f32
    %7 = vector.broadcast %cst : f32 to vector<16x128xf32>
    %8 = arith.maximumf %6, %7 : vector<16x128xf32>
    %9 = arith.truncf %8 : vector<16x128xf32> to vector<16x128xbf16>
    %c0_5 = arith.constant 0 : index
    %c0_6 = arith.constant 0 : index
    %10 = vector.load %arg4[%c0_5, %c0_6] : memref<128x128xbf16, #tpu.memory_space<vmem>>, vector<128x128xbf16>
    %cst_7 = arith.constant dense<0.000000e+00> : vector<16x128xf32>
    %11 = tpu.matmul %9, %10, %cst_7 {dimension_numbers = #tpu.dot_dimension_numbers<[1], [0], [0], [1], [0, 0, 1, 1], [], []>} : vector<16x128xbf16>, vector<128x128xbf16>, vector<16x128xf32> -> vector<16x128xf32>
    %c0_8 = arith.constant 0 : index
    %c0_9 = arith.constant 0 : index
    %12 = vector.load %arg5[%c0_8, %c0_9] : memref<16x128xf32, #tpu.memory_space<vmem>>, vector<16x128xf32>
    tpu.vector_store %arg5[%c0_8, %c0_9], %11 {strides = array<i32>} : memref<16x128xf32, #tpu.memory_space<vmem>>, vector<16x128xf32>,
    %13 = tpu.iota {dimensions = array<i32: 0>} : vector<16x1xi32>
    %c16_i32 = arith.constant 16 : i32
    %14 = arith.muli %arg0, %c16_i32 : i32
    %15 = vector.broadcast %14 : i32 to vector<16x1xi32>
    %16 = arith.addi %13, %15 : vector<16x1xi32>
    %c16_i32_10 = arith.constant 16 : i32
    %17 = vector.broadcast %c16_i32_10 : i32 to vector<16x1xi32>
    %18 = arith.cmpi slt, %16, %17 : vector<16x1xi32>
    %cst_11 = arith.constant 0.000000e+00 : f32
    %19 = vector.shape_cast %18 : vector<16x1xi1> to vector<16x1xi1>
    %20 = vector.broadcast %19 : vector<16x1xi1> to vector<16x128xi1>
    %21 = vector.broadcast %cst_11 : f32 to vector<16x128xf32>
    %22 = arith.select %20, %11, %21 : vector<16x128xi1>, vector<16x128xf32>
    %cst_12 = arith.constant dense<0.000000e+00> : vector<128xf32>
    %23 = vector.multi_reduction <add>, %22, %cst_12 [0] : vector<16x128xf32> to vector<128xf32>
    %24 = vector.shape_cast %23 : vector<128xf32> to vector<1x128xf32>
    %c16_i32_13 = arith.constant 16 : i32
    %25 = arith.muli %arg0, %c16_i32_13 : i32
    %c16_i32_14 = arith.constant 16 : i32
    %26 = arith.subi %c16_i32_14, %25 : i32
    %c16_i32_15 = arith.constant 16 : i32
    %27 = arith.minsi %c16_i32_15, %26 : i32
    %c1_i32 = arith.constant 1 : i32
    %28 = arith.maxsi %27, %c1_i32 : i32
    %29 = arith.sitofp %28 : i32 to f32
    %cst_16 = arith.constant 1.000000e+00 : f32
    %30 = arith.divf %cst_16, %29 : f32
    %31 = vector.broadcast %30 : f32 to vector<1x128xf32>
    %32 = arith.mulf %24, %31 : vector<1x128xf32>
    %33 = vector.broadcast %32 : vector<1x128xf32> to vector<16x128xf32>
    %34 = arith.subf %11, %33 : vector<16x128xf32>
    %cst_17 = arith.constant 0.000000e+00 : f32
    %35 = vector.shape_cast %18 : vector<16x1xi1> to vector<16x1xi1>
    %36 = vector.broadcast %35 : vector<16x1xi1> to vector<16x128xi1>
    %37 = vector.broadcast %cst_17 : f32 to vector<16x128xf32>
    %38 = arith.select %36, %34, %37 : vector<16x128xi1>, vector<16x128xf32>
    %39 = arith.mulf %38, %38 : vector<16x128xf32>
    %cst_18 = arith.constant dense<0.000000e+00> : vector<128xf32>
    %40 = vector.multi_reduction <add>, %39, %cst_18 [0] : vector<16x128xf32> to vector<128xf32>
    %41 = vector.shape_cast %40 : vector<128xf32> to vector<1x128xf32>
    %42 = tpu.concatenate %24, %41 in 0 : vector<1x128xf32>, vector<1x128xf32> -> vector<2x128xf32>
    %43 = vector.shape_cast %42 : vector<2x128xf32> to vector<1x2x128xf32>
    %c0_19 = arith.constant 0 : index
    %c0_20 = arith.constant 0 : index
    %c0_21 = arith.constant 0 : index
    %44 = vector.load %arg6[%c0_19, %c0_20, %c0_21] : memref<1x2x128xf32, #tpu.memory_space<vmem>>, vector<1x2x128xf32>
    tpu.vector_store %arg6[%c0_19, %c0_20, %c0_21], %43 {strides = array<i32>} : memref<1x2x128xf32, #tpu.memory_space<vmem>>, vector<1x2x128xf32>,
    return
  }
  func.func @transform_0(%arg0: i32) -> (i32, i32) {
    %c0_i32 = arith.constant 0 : i32
    %c0_i32_0 = arith.constant 0 : i32
    return %arg0, %c0_i32 : i32, i32
  }
  func.func @transform_1(%arg0: i32) -> (i32, i32) {
    %c0_i32 = arith.constant 0 : i32
    %c0_i32_0 = arith.constant 0 : i32
    %c0_i32_1 = arith.constant 0 : i32
    return %c0_i32, %c0_i32_0 : i32, i32
  }
  func.func @transform_2(%arg0: i32) -> (i32, i32) {
    %c0_i32 = arith.constant 0 : i32
    %c0_i32_0 = arith.constant 0 : i32
    %c0_i32_1 = arith.constant 0 : i32
    return %c0_i32, %c0_i32_0 : i32, i32
  }
  func.func @transform_3(%arg0: i32) -> (i32, i32) {
    %c0_i32 = arith.constant 0 : i32
    %c0_i32_0 = arith.constant 0 : i32
    %c0_i32_1 = arith.constant 0 : i32
    return %c0_i32, %c0_i32_0 : i32, i32
  }
  func.func @transform_4(%arg0: i32) -> (i32, i32) {
    %c0_i32 = arith.constant 0 : i32
    %c0_i32_0 = arith.constant 0 : i32
    return %arg0, %c0_i32 : i32, i32
  }
  func.func @transform_5(%arg0: i32) -> (i32, i32, i32) {
    %c0_i32 = arith.constant 0 : i32
    %c0_i32_0 = arith.constant 0 : i32
    %c0_i32_1 = arith.constant 0 : i32
    return %arg0, %c0_i32, %c0_i32_0 : i32, i32, i32
  }
}

module attributes {stable_mosaic.version = 11 : i64} {
  func.func @kernel(%arg0: i32, %arg1: memref<16x16xf32, #tpu.memory_space<vmem>>, %arg2: memref<16x128xbf16, #tpu.memory_space<vmem>>, %arg3: memref<16x128xf32, #tpu.memory_space<vmem>>, %arg4: memref<1x2x128xf32, #tpu.memory_space<vmem>>) attributes {dimension_semantics = [#tpu.dimension_semantics<parallel>], iteration_bounds = array<i64: 1>, scalar_prefetch = 0 : i64, scratch_operands = 0 : i64, tpu.core_type = #tpu.core_type<tc>, window_params = [{transform_indices = @transform_0, window_bounds = array<i64: 16, 16>}, {pipeline_mode = #tpu.pipeline_mode<synchronous>, transform_indices = @transform_1, window_bounds = array<i64: 16, 128>}, {transform_indices = @transform_2, window_bounds = array<i64: 16, 128>}, {transform_indices = @transform_3, window_bounds = array<i64: 1, 2, 128>}]} {
    %c0 = arith.constant 0 : index
    %c0_0 = arith.constant 0 : index
    %0 = vector.load %arg1[%c0, %c0_0] : memref<16x16xf32, #tpu.memory_space<vmem>>, vector<16x16xf32>
    %1 = arith.truncf %0 : vector<16x16xf32> to vector<16x16xbf16>
    %c0_1 = arith.constant 0 : index
    %c0_2 = arith.constant 0 : index
    %2 = vector.load %arg2[%c0_1, %c0_2] : memref<16x128xbf16, #tpu.memory_space<vmem>>, vector<16x128xbf16>
    %cst = arith.constant dense<0.000000e+00> : vector<16x128xf32>
    %3 = tpu.matmul %1, %2, %cst {dimension_numbers = #tpu.dot_dimension_numbers<[1], [0], [0], [1], [0, 0, 1, 1], [], []>} : vector<16x16xbf16>, vector<16x128xbf16>, vector<16x128xf32> -> vector<16x128xf32>
    %c0_3 = arith.constant 0 : index
    %c0_4 = arith.constant 0 : index
    %4 = vector.load %arg3[%c0_3, %c0_4] : memref<16x128xf32, #tpu.memory_space<vmem>>, vector<16x128xf32>
    tpu.vector_store %arg3[%c0_3, %c0_4], %3 {strides = array<i32>} : memref<16x128xf32, #tpu.memory_space<vmem>>, vector<16x128xf32>,
    %5 = tpu.iota {dimensions = array<i32: 0>} : vector<16x1xi32>
    %c16_i32 = arith.constant 16 : i32
    %6 = arith.muli %arg0, %c16_i32 : i32
    %7 = vector.broadcast %6 : i32 to vector<16x1xi32>
    %8 = arith.addi %5, %7 : vector<16x1xi32>
    %c16_i32_5 = arith.constant 16 : i32
    %9 = vector.broadcast %c16_i32_5 : i32 to vector<16x1xi32>
    %10 = arith.cmpi slt, %8, %9 : vector<16x1xi32>
    %cst_6 = arith.constant 0.000000e+00 : f32
    %11 = vector.shape_cast %10 : vector<16x1xi1> to vector<16x1xi1>
    %12 = vector.broadcast %11 : vector<16x1xi1> to vector<16x128xi1>
    %13 = vector.broadcast %cst_6 : f32 to vector<16x128xf32>
    %14 = arith.select %12, %3, %13 : vector<16x128xi1>, vector<16x128xf32>
    %cst_7 = arith.constant dense<0.000000e+00> : vector<128xf32>
    %15 = vector.multi_reduction <add>, %14, %cst_7 [0] : vector<16x128xf32> to vector<128xf32>
    %16 = vector.shape_cast %15 : vector<128xf32> to vector<1x128xf32>
    %c16_i32_8 = arith.constant 16 : i32
    %17 = arith.muli %arg0, %c16_i32_8 : i32
    %c16_i32_9 = arith.constant 16 : i32
    %18 = arith.subi %c16_i32_9, %17 : i32
    %c16_i32_10 = arith.constant 16 : i32
    %19 = arith.minsi %c16_i32_10, %18 : i32
    %c1_i32 = arith.constant 1 : i32
    %20 = arith.maxsi %19, %c1_i32 : i32
    %21 = arith.sitofp %20 : i32 to f32
    %cst_11 = arith.constant 1.000000e+00 : f32
    %22 = arith.divf %cst_11, %21 : f32
    %23 = vector.broadcast %22 : f32 to vector<1x128xf32>
    %24 = arith.mulf %16, %23 : vector<1x128xf32>
    %25 = vector.broadcast %24 : vector<1x128xf32> to vector<16x128xf32>
    %26 = arith.subf %3, %25 : vector<16x128xf32>
    %cst_12 = arith.constant 0.000000e+00 : f32
    %27 = vector.shape_cast %10 : vector<16x1xi1> to vector<16x1xi1>
    %28 = vector.broadcast %27 : vector<16x1xi1> to vector<16x128xi1>
    %29 = vector.broadcast %cst_12 : f32 to vector<16x128xf32>
    %30 = arith.select %28, %26, %29 : vector<16x128xi1>, vector<16x128xf32>
    %31 = arith.mulf %30, %30 : vector<16x128xf32>
    %cst_13 = arith.constant dense<0.000000e+00> : vector<128xf32>
    %32 = vector.multi_reduction <add>, %31, %cst_13 [0] : vector<16x128xf32> to vector<128xf32>
    %33 = vector.shape_cast %32 : vector<128xf32> to vector<1x128xf32>
    %34 = tpu.concatenate %16, %33 in 0 : vector<1x128xf32>, vector<1x128xf32> -> vector<2x128xf32>
    %35 = vector.shape_cast %34 : vector<2x128xf32> to vector<1x2x128xf32>
    %c0_14 = arith.constant 0 : index
    %c0_15 = arith.constant 0 : index
    %c0_16 = arith.constant 0 : index
    %36 = vector.load %arg4[%c0_14, %c0_15, %c0_16] : memref<1x2x128xf32, #tpu.memory_space<vmem>>, vector<1x2x128xf32>
    tpu.vector_store %arg4[%c0_14, %c0_15, %c0_16], %35 {strides = array<i32>} : memref<1x2x128xf32, #tpu.memory_space<vmem>>, vector<1x2x128xf32>,
    return
  }
  func.func @transform_0(%arg0: i32) -> (i32, i32) {
    %c0_i32 = arith.constant 0 : i32
    %c0_i32_0 = arith.constant 0 : i32
    return %arg0, %c0_i32 : i32, i32
  }
  func.func @transform_1(%arg0: i32) -> (i32, i32) {
    %c0_i32 = arith.constant 0 : i32
    %c0_i32_0 = arith.constant 0 : i32
    %c0_i32_1 = arith.constant 0 : i32
    return %c0_i32, %c0_i32_0 : i32, i32
  }
  func.func @transform_2(%arg0: i32) -> (i32, i32) {
    %c0_i32 = arith.constant 0 : i32
    %c0_i32_0 = arith.constant 0 : i32
    return %arg0, %c0_i32 : i32, i32
  }
  func.func @transform_3(%arg0: i32) -> (i32, i32, i32) {
    %c0_i32 = arith.constant 0 : i32
    %c0_i32_0 = arith.constant 0 : i32
    %c0_i32_1 = arith.constant 0 : i32
    return %arg0, %c0_i32, %c0_i32_0 : i32, i32, i32
  }
}

module attributes {stable_mosaic.version = 11 : i64} {
  func.func @_last_kernel(%arg0: i32, %arg1: memref<16x128xf32, #tpu.memory_space<vmem>>, %arg2: memref<1x128xf32, #tpu.memory_space<vmem>>, %arg3: memref<1x128xf32, #tpu.memory_space<vmem>>, %arg4: memref<128x128xbf16, #tpu.memory_space<vmem>>, %arg5: memref<1x128xf32, #tpu.memory_space<vmem>>, %arg6: memref<16x128xf32, #tpu.memory_space<vmem>>) attributes {dimension_semantics = [#tpu.dimension_semantics<parallel>], iteration_bounds = array<i64: 1>, scalar_prefetch = 0 : i64, scratch_operands = 0 : i64, tpu.core_type = #tpu.core_type<tc>, window_params = [{transform_indices = @transform_0, window_bounds = array<i64: 16, 128>}, {pipeline_mode = #tpu.pipeline_mode<synchronous>, transform_indices = @transform_1, window_bounds = array<i64: 1, 128>}, {pipeline_mode = #tpu.pipeline_mode<synchronous>, transform_indices = @transform_2, window_bounds = array<i64: 1, 128>}, {pipeline_mode = #tpu.pipeline_mode<synchronous>, transform_indices = @transform_3, window_bounds = array<i64: 128, 128>}, {pipeline_mode = #tpu.pipeline_mode<synchronous>, transform_indices = @transform_4, window_bounds = array<i64: 1, 128>}, {transform_indices = @transform_5, window_bounds = array<i64: 16, 128>}]} {
    %c0 = arith.constant 0 : index
    %c0_0 = arith.constant 0 : index
    %0 = vector.load %arg1[%c0, %c0_0] : memref<16x128xf32, #tpu.memory_space<vmem>>, vector<16x128xf32>
    %c0_1 = arith.constant 0 : index
    %c0_2 = arith.constant 0 : index
    %1 = vector.load %arg2[%c0_1, %c0_2] : memref<1x128xf32, #tpu.memory_space<vmem>>, vector<1x128xf32>
    %2 = vector.broadcast %1 : vector<1x128xf32> to vector<16x128xf32>
    %3 = arith.mulf %0, %2 : vector<16x128xf32>
    %c0_3 = arith.constant 0 : index
    %c0_4 = arith.constant 0 : index
    %4 = vector.load %arg3[%c0_3, %c0_4] : memref<1x128xf32, #tpu.memory_space<vmem>>, vector<1x128xf32>
    %5 = vector.broadcast %4 : vector<1x128xf32> to vector<16x128xf32>
    %6 = arith.addf %3, %5 : vector<16x128xf32>
    %cst = arith.constant 0.000000e+00 : f32
    %7 = vector.broadcast %cst : f32 to vector<16x128xf32>
    %8 = arith.maximumf %6, %7 : vector<16x128xf32>
    %9 = arith.truncf %8 : vector<16x128xf32> to vector<16x128xbf16>
    %c0_5 = arith.constant 0 : index
    %c0_6 = arith.constant 0 : index
    %10 = vector.load %arg4[%c0_5, %c0_6] : memref<128x128xbf16, #tpu.memory_space<vmem>>, vector<128x128xbf16>
    %cst_7 = arith.constant dense<0.000000e+00> : vector<16x128xf32>
    %11 = tpu.matmul %9, %10, %cst_7 {dimension_numbers = #tpu.dot_dimension_numbers<[1], [0], [0], [1], [0, 0, 1, 1], [], []>} : vector<16x128xbf16>, vector<128x128xbf16>, vector<16x128xf32> -> vector<16x128xf32>
    %c0_8 = arith.constant 0 : index
    %c0_9 = arith.constant 0 : index
    %12 = vector.load %arg5[%c0_8, %c0_9] : memref<1x128xf32, #tpu.memory_space<vmem>>, vector<1x128xf32>
    %13 = vector.broadcast %12 : vector<1x128xf32> to vector<16x128xf32>
    %14 = arith.addf %11, %13 : vector<16x128xf32>
    %c0_10 = arith.constant 0 : index
    %c0_11 = arith.constant 0 : index
    %15 = vector.load %arg6[%c0_10, %c0_11] : memref<16x128xf32, #tpu.memory_space<vmem>>, vector<16x128xf32>
    tpu.vector_store %arg6[%c0_10, %c0_11], %14 {strides = array<i32>} : memref<16x128xf32, #tpu.memory_space<vmem>>, vector<16x128xf32>,
    return
  }
  func.func @transform_0(%arg0: i32) -> (i32, i32) {
    %c0_i32 = arith.constant 0 : i32
    %c0_i32_0 = arith.constant 0 : i32
    return %arg0, %c0_i32 : i32, i32
  }
  func.func @transform_1(%arg0: i32) -> (i32, i32) {
    %c0_i32 = arith.constant 0 : i32
    %c0_i32_0 = arith.constant 0 : i32
    %c0_i32_1 = arith.constant 0 : i32
    return %c0_i32, %c0_i32_0 : i32, i32
  }
  func.func @transform_2(%arg0: i32) -> (i32, i32) {
    %c0_i32 = arith.constant 0 : i32
    %c0_i32_0 = arith.constant 0 : i32
    %c0_i32_1 = arith.constant 0 : i32
    return %c0_i32, %c0_i32_0 : i32, i32
  }
  func.func @transform_3(%arg0: i32) -> (i32, i32) {
    %c0_i32 = arith.constant 0 : i32
    %c0_i32_0 = arith.constant 0 : i32
    %c0_i32_1 = arith.constant 0 : i32
    return %c0_i32, %c0_i32_0 : i32, i32
  }
  func.func @transform_4(%arg0: i32) -> (i32, i32) {
    %c0_i32 = arith.constant 0 : i32
    %c0_i32_0 = arith.constant 0 : i32
    %c0_i32_1 = arith.constant 0 : i32
    return %c0_i32, %c0_i32_0 : i32, i32
  }
  func.func @transform_5(%arg0: i32) -> (i32, i32) {
    %c0_i32 = arith.constant 0 : i32
    %c0_i32_0 = arith.constant 0 : i32
    return %arg0, %c0_i32 : i32, i32
  }
}

</mosaic_0001>

<llo_original>
// kernel: forward.5
$region0: #{forward.5}
  #allocation0 [shape = 'u32[]', space=smem, size = 0x4, offset = 0x4, fixed_abs, tag = 'smem constant byte address 0x4 - core index']
  #allocation1 [shape = 'u32[144,128]{1,0:T(1,128)}', space=vmem, size = 0x12000, scoped, tag = 'internal scratch']
  %s0 = inlined_call_operand.vmem [shape: f32[16,128], index: 0, kind: input, shape index: {}]
  %s1 = inlined_call_operand.vmem [shape: f32[1,128], index: 1, kind: input, shape index: {}]
  %s2 = inlined_call_operand.vmem [shape: f32[1,128], index: 2, kind: input, shape index: {}]
  %s3 = inlined_call_operand.vmem [shape: bf16[128,128], index: 3, kind: input, shape index: {}]
  %s4 = inlined_call_operand.vmem [shape: f32[1,128], index: 4, kind: input, shape index: {}]
  %s5 = inlined_call_operand.vmem [shape: f32[16,128], index: 5, kind: output, shape index: {}]
  %s6 = sld [smem:[#allocation0]]
  $region30: #{forward.5} parent=0
    _
  %s8 = ssub.s32 1, %s6
  %s9 = scalar_select 0, %s8, %s6
  // Predicated region
  $region2: #{forward.5} parent=0 // pred_check
    _
  $region3: #{forward.5} parent=0 // pred_check_branch
    %11 = sbr.rel (0) target = $region5
  $region4: #{forward.5} parent=0 // pred_region
    _
  $region5: #{forward.5} parent=0 // pred_fallthru
    _
  // Predicated region
  $region6: #{forward.5} parent=0 // pred_check
    _
  $region7: #{forward.5} parent=0 // pred_check_branch
    %13 = sbr.rel (0) target = $region9
  $region8: #{forward.5} parent=0 // pred_region
    _
  $region9: #{forward.5} parent=0 // pred_fallthru
    _
  // Predicated region
  $region10: #{forward.5} parent=0 // pred_check
    _
  $region11: #{forward.5} parent=0 // pred_check_branch
    %15 = sbr.rel (0) target = $region13
  $region12: #{forward.5} parent=0 // pred_region
    _
  $region13: #{forward.5} parent=0 // pred_fallthru
    _
  // Predicated region
  $region14: #{forward.5} parent=0 // pred_check
    _
  $region15: #{forward.5} parent=0 // pred_check_branch
    %17 = sbr.rel (0) target = $region17
  $region16: #{forward.5} parent=0 // pred_region
    _
  $region17: #{forward.5} parent=0 // pred_fallthru
    _
  // Predicated region
  $region18: #{forward.5} parent=0 // pred_check
    _
  $region19: #{forward.5} parent=0 // pred_check_branch
    %19 = sbr.rel (0) target = $region21
  $region20: #{forward.5} parent=0 // pred_region
    _
  $region21: #{forward.5} parent=0 // pred_fallthru
    _
  %v21 = vld [vmem:[%s0] sm:$0xff]
  %v22 = vld [vmem:[%s0 + $0x8] sm:$0xff]
  %v23 = vld [vmem:[%s1] sm:$0x1]
  %v25 = vlaneseq
  %v26 = vshrl.u32 %v25, 7
  %v27 = vsub.s32 0, %v26
  %v28 = vrot.slane %v23, %v27
  %v30 = vmul.f32 %v21, %v28
  %v31 = vmul.f32 %v22, %v28
  %v32 = vld [vmem:[%s2] sm:$0x1]
  %v34 = vlaneseq
  %v35 = vshrl.u32 %v34, 7
  %v36 = vsub.s32 0, %v35
  %v37 = vrot.slane %v32, %v36
  %v39 = vadd.f32 %v30, %v37
  %v40 = vadd.f32 %v31, %v37
  %v41 = vmax.f32 %v39, 0.0
  %v42 = vmax.f32 %v40, 0.0
  %v43 = vpack.c.bf16 %v42, %v41
  %v44 = vld [vmem:[%s3] sm:$0xf]
  %v45 = vld [vmem:[%s3 + $0x4] sm:$0xf]
  %v46 = vld [vmem:[%s3 + $0x8] sm:$0xf]
  %v47 = vld [vmem:[%s3 + $0xc] sm:$0xf]
  %v48 = vld [vmem:[%s3 + $0x10] sm:$0xf]
  %v49 = vld [vmem:[%s3 + $0x14] sm:$0xf]
  %v50 = vld [vmem:[%s3 + $0x18] sm:$0xf]
  %v51 = vld [vmem:[%s3 + $0x1c] sm:$0xf]
  %v52 = vld [vmem:[%s3 + $0x20] sm:$0xf]
  %v53 = vld [vmem:[%s3 + $0x24] sm:$0xf]
  %v54 = vld [vmem:[%s3 + $0x28] sm:$0xf]
  %v55 = vld [vmem:[%s3 + $0x2c] sm:$0xf]
  %v56 = vld [vmem:[%s3 + $0x30] sm:$0xf]
  %v57 = vld [vmem:[%s3 + $0x34] sm:$0xf]
  %v58 = vld [vmem:[%s3 + $0x38] sm:$0xf]
  %v59 = vld [vmem:[%s3 + $0x3c] sm:$0xf]
  %v60 = vld [vmem:[%s4] sm:$0x1]
  %v62 = vlaneseq
  %v63 = vshrl.u32 %v62, 7
  %v64 = vsub.s32 0, %v63
  %v65 = vrot.slane %v60, %v64
  %v83 = vunpack.c.l.b16 %v44
  %v84 = vunpack.c.l.b16 %v45
  %v85 = vunpack.c.l.b16 %v46
  %v86 = vunpack.c.l.b16 %v47
  %v87 = vunpack.c.l.b16 %v48
  %v88 = vunpack.c.l.b16 %v49
  %v89 = vunpack.c.l.b16 %v50
  %v90 = vunpack.c.l.b16 %v51
  %v91 = vunpack.c.l.b16 %v52
  %v92 = vunpack.c.l.b16 %v53
  %v93 = vunpack.c.l.b16 %v54
  %v94 = vunpack.c.l.b16 %v55
  %v95 = vunpack.c.l.b16 %v56
  %v96 = vunpack.c.l.b16 %v57
  %v97 = vunpack.c.l.b16 %v58
  %v98 = vunpack.c.l.b16 %v59
  %v99 = vpack.c.b16 %v84, %v83
  %v100 = vpack.c.b16 %v86, %v85
  %v101 = vpack.c.b16 %v88, %v87
  %v102 = vpack.c.b16 %v90, %v89
  %v103 = vpack.c.b16 %v92, %v91
  %v104 = vpack.c.b16 %v94, %v93
  %v105 = vpack.c.b16 %v96, %v95
  %v106 = vpack.c.b16 %v98, %v97
  %115 = vmatprep.subr.bf16.mxu0 0
  %116 = vmatpush1.bf16.msra.mxu0 %v99
  %117 = vmatprep.subr.bf16.mxu0 0
  %118 = vmatpush1.bf16.msra.mxu0 %v100
  %119 = vmatprep.subr.bf16.mxu0 0
  %120 = vmatpush1.bf16.msra.mxu0 %v101
  %121 = vmatprep.subr.bf16.mxu0 0
  %122 = vmatpush1.bf16.msra.mxu0 %v102
  %123 = vmatprep.subr.bf16.mxu0 0
  %124 = vmatpush1.bf16.msra.mxu0 %v103
  %125 = vmatprep.subr.bf16.mxu0 0
  %126 = vmatpush1.bf16.msra.mxu0 %v104
  %127 = vmatprep.subr.bf16.mxu0 0
  %128 = vmatpush1.bf16.msra.mxu0 %v105
  %129 = vmatprep.subr.bf16.mxu0 0
  %130 = vmatpush1.bf16.msra.mxu0 %v106
  %131 = vmatprep.subr.bf16.mxu0 0
  %132 = vmatpush1.bf16.msra.mxu0 0
  %133 = vmatprep.subr.bf16.mxu0 0
  %134 = vmatpush1.bf16.msra.mxu0 0
  %135 = vmatprep.subr.bf16.mxu0 0
  %136 = vmatpush1.bf16.msra.mxu0 0
  %137 = vmatprep.subr.bf16.mxu0 0
  %138 = vmatpush1.bf16.msra.mxu0 0
  %139 = vmatprep.subr.bf16.mxu0 0
  %140 = vmatpush1.bf16.msra.mxu0 0
  %141 = vmatprep.subr.bf16.mxu0 0
  %142 = vmatpush1.bf16.msra.mxu0 0
  %143 = vmatprep.subr.bf16.mxu0 0
  %144 = vmatpush1.bf16.msra.mxu0 0
  %145 = vmatprep.subr.bf16.mxu0 0
  %146 = vmatpush1.bf16.msra.mxu0 0
  %147 = vmatprep.mubr.bf16.mxu0 0
  %148 = vmatmul.mubr.bf16.gmra.mrb[0].mxu0 %v43
  %v149 = vpop.f32.mrb[0].mxu0
  %v150 = vadd.f32 %v65, %v149
  %v151 = vpop.f32.mrb[0].mxu0
  %v152 = vpop.f32.mrb[0].mxu0
  %v153 = vadd.f32 %v65, %v152
  %v154 = vpop.f32.mrb[0].mxu0
  %155 = vdwg.mxu0
  %156 = vst [vmem:[%s5] sm:$0xff] %v150
  %157 = vst [vmem:[%s5 + $0x8] sm:$0xff] %v153
  // Predicated region
  $region22: #{forward.5} parent=0 // pred_check
    _
  $region23: #{forward.5} parent=0 // pred_check_branch
    %159 = sbr.rel (0) target = $region25
  $region24: #{forward.5} parent=0 // pred_region
    _
  $region25: #{forward.5} parent=0 // pred_fallthru
    _
  // Predicated region
  $region26: #{forward.5} parent=0 // pred_check
    _
  $region27: #{forward.5} parent=0 // pred_check_branch
    %161 = sbr.rel (0) target = $region29
  $region28: #{forward.5} parent=0 // pred_region
    _
  $region29: #{forward.5} parent=0 // pred_fallthru
    _

// kernel: forward.4
$region0: #{forward.4}
  #allocation0 [shape = 'u32[]', space=smem, size = 0x4, offset = 0x4, fixed_abs, tag = 'smem constant byte address 0x4 - core index']
  #allocation1 [shape = 'u32[144,128]{1,0:T(1,128)}', space=vmem, size = 0x12000, scoped, tag = 'internal scratch']
  %s0 = inlined_call_operand.vmem [shape: f32[16,128], index: 0, kind: input, shape index: {}]
  %s1 = inlined_call_operand.vmem [shape: f32[1,128], index: 1, kind: input, shape index: {}]
  %s2 = inlined_call_operand.vmem [shape: f32[1,128], index: 2, kind: input, shape index: {}]
  %s3 = inlined_call_operand.vmem [shape: bf16[128,128], index: 3, kind: input, shape index: {}]
  %s4 = inlined_call_operand.vmem [shape: f32[16,128], index: 4, kind: output, shape index: {0}]
  %s5 = inlined_call_operand.vmem [shape: f32[1,2,128], index: 5, kind: output, shape index: {1}]
  %6 = xla_tuple %s4, %s5
  %s7 = sld [smem:[#allocation0]]
  $region34: #{forward.4} parent=0
    _
  %s9 = ssub.s32 1, %s7
  %s10 = scalar_select 0, %s9, %s7
  // Predicated region
  $region2: #{forward.4} parent=0 // pred_check
    _
  $region3: #{forward.4} parent=0 // pred_check_branch
    %12 = sbr.rel (0) target = $region5
  $region4: #{forward.4} parent=0 // pred_region
    _
  $region5: #{forward.4} parent=0 // pred_fallthru
    _
  // Predicated region
  $region6: #{forward.4} parent=0 // pred_check
    _
  $region7: #{forward.4} parent=0 // pred_check_branch
    %14 = sbr.rel (0) target = $region9
  $region8: #{forward.4} parent=0 // pred_region
    _
  $region9: #{forward.4} parent=0 // pred_fallthru
    _
  // Predicated region
  $region10: #{forward.4} parent=0 // pred_check
    _
  $region11: #{forward.4} parent=0 // pred_check_branch
    %16 = sbr.rel (0) target = $region13
  $region12: #{forward.4} parent=0 // pred_region
    _
  $region13: #{forward.4} parent=0 // pred_fallthru
    _
  // Predicated region
  $region14: #{forward.4} parent=0 // pred_check
    _
  $region15: #{forward.4} parent=0 // pred_check_branch
    %18 = sbr.rel (0) target = $region17
  $region16: #{forward.4} parent=0 // pred_region
    _
  $region17: #{forward.4} parent=0 // pred_fallthru
    _
  %v20 = vld [vmem:[%s0] sm:$0xff]
  %v21 = vld [vmem:[%s0 + $0x8] sm:$0xff]
  %v22 = vld [vmem:[%s1] sm:$0x1]
  %v24 = vlaneseq
  %v25 = vshrl.u32 %v24, 7
  %v26 = vsub.s32 0, %v25
  %v27 = vrot.slane %v22, %v26
  %v29 = vmul.f32 %v20, %v27
  %v30 = vmul.f32 %v21, %v27
  %v31 = vld [vmem:[%s2] sm:$0x1]
  %v33 = vlaneseq
  %v34 = vshrl.u32 %v33, 7
  %v35 = vsub.s32 0, %v34
  %v36 = vrot.slane %v31, %v35
  %v38 = vadd.f32 %v29, %v36
  %v39 = vadd.f32 %v30, %v36
  %v40 = vmax.f32 %v38, 0.0
  %v41 = vmax.f32 %v39, 0.0
  %v42 = vpack.c.bf16 %v41, %v40
  %v43 = vld [vmem:[%s3] sm:$0xf]
  %v44 = vld [vmem:[%s3 + $0x4] sm:$0xf]
  %v45 = vld [vmem:[%s3 + $0x8] sm:$0xf]
  %v46 = vld [vmem:[%s3 + $0xc] sm:$0xf]
  %v47 = vld [vmem:[%s3 + $0x10] sm:$0xf]
  %v48 = vld [vmem:[%s3 + $0x14] sm:$0xf]
  %v49 = vld [vmem:[%s3 + $0x18] sm:$0xf]
  %v50 = vld [vmem:[%s3 + $0x1c] sm:$0xf]
  %v51 = vld [vmem:[%s3 + $0x20] sm:$0xf]
  %v52 = vld [vmem:[%s3 + $0x24] sm:$0xf]
  %v53 = vld [vmem:[%s3 + $0x28] sm:$0xf]
  %v54 = vld [vmem:[%s3 + $0x2c] sm:$0xf]
  %v55 = vld [vmem:[%s3 + $0x30] sm:$0xf]
  %v56 = vld [vmem:[%s3 + $0x34] sm:$0xf]
  %v57 = vld [vmem:[%s3 + $0x38] sm:$0xf]
  %v58 = vld [vmem:[%s3 + $0x3c] sm:$0xf]
  %v75 = vunpack.c.l.b16 %v43
  %v76 = vunpack.c.l.b16 %v44
  %v77 = vunpack.c.l.b16 %v45
  %v78 = vunpack.c.l.b16 %v46
  %v79 = vunpack.c.l.b16 %v47
  %v80 = vunpack.c.l.b16 %v48
  %v81 = vunpack.c.l.b16 %v49
  %v82 = vunpack.c.l.b16 %v50
  %v83 = vunpack.c.l.b16 %v51
  %v84 = vunpack.c.l.b16 %v52
  %v85 = vunpack.c.l.b16 %v53
  %v86 = vunpack.c.l.b16 %v54
  %v87 = vunpack.c.l.b16 %v55
  %v88 = vunpack.c.l.b16 %v56
  %v89 = vunpack.c.l.b16 %v57
  %v90 = vunpack.c.l.b16 %v58
  %v91 = vpack.c.b16 %v76, %v75
  %v92 = vpack.c.b16 %v78, %v77
  %v93 = vpack.c.b16 %v80, %v79
  %v94 = vpack.c.b16 %v82, %v81
  %v95 = vpack.c.b16 %v84, %v83
  %v96 = vpack.c.b16 %v86, %v85
  %v97 = vpack.c.b16 %v88, %v87
  %v98 = vpack.c.b16 %v90, %v89
  %107 = vmatprep.subr.bf16.mxu0 0
  %108 = vmatpush1.bf16.msra.mxu0 %v91
  %109 = vmatprep.subr.bf16.mxu0 0
  %110 = vmatpush1.bf16.msra.mxu0 %v92
  %111 = vmatprep.subr.bf16.mxu0 0
  %112 = vmatpush1.bf16.msra.mxu0 %v93
  %113 = vmatprep.subr.bf16.mxu0 0
  %114 = vmatpush1.bf16.msra.mxu0 %v94
  %115 = vmatprep.subr.bf16.mxu0 0
  %116 = vmatpush1.bf16.msra.mxu0 %v95
  %117 = vmatprep.subr.bf16.mxu0 0
  %118 = vmatpush1.bf16.msra.mxu0 %v96
  %119 = vmatprep.subr.bf16.mxu0 0
  %120 = vmatpush1.bf16.msra.mxu0 %v97
  %121 = vmatprep.subr.bf16.mxu0 0
  %122 = vmatpush1.bf16.msra.mxu0 %v98
  %123 = vmatprep.subr.bf16.mxu0 0
  %124 = vmatpush1.bf16.msra.mxu0 0
  %125 = vmatprep.subr.bf16.mxu0 0
  %126 = vmatpush1.bf16.msra.mxu0 0
  %127 = vmatprep.subr.bf16.mxu0 0
  %128 = vmatpush1.bf16.msra.mxu0 0
  %129 = vmatprep.subr.bf16.mxu0 0
  %130 = vmatpush1.bf16.msra.mxu0 0
  %131 = vmatprep.subr.bf16.mxu0 0
  %132 = vmatpush1.bf16.msra.mxu0 0
  %133 = vmatprep.subr.bf16.mxu0 0
  %134 = vmatpush1.bf16.msra.mxu0 0
  %135 = vmatprep.subr.bf16.mxu0 0
  %136 = vmatpush1.bf16.msra.mxu0 0
  %137 = vmatprep.subr.bf16.mxu0 0
  %138 = vmatpush1.bf16.msra.mxu0 0
  %139 = vmatprep.mubr.bf16.mxu0 0
  %140 = vmatmul.mubr.bf16.gmra.mrb[0].mxu0 %v42
  %v141 = vpop.f32.mrb[0].mxu0
  %v142 = vadd.f32 0.0, %v141
  %v143 = vpop.f32.mrb[0].mxu0
  %v144 = vpop.f32.mrb[0].mxu0
  %v145 = vadd.f32 0.0, %v144
  %v146 = vpop.f32.mrb[0].mxu0
  %147 = vdwg.mxu0
  %148 = vst [vmem:[%s4] sm:$0xff] %v142
  %149 = vst [vmem:[%s4 + $0x8] sm:$0xff] %v145
  %v150 = vlaneseq
  %v151 = vshrl.u32 %v150, 7
  %v152 = vadd.s32 %v151, 8
  %s153 = smul.u32 0, 16
  %v154 = vstv %s153
  %v155 = vadd.s32 %v151, %v154
  %v156 = vadd.s32 %v152, %v154
  %vm157 = vcmp.lt.s32.totalorder %v155, 16
  %vm158 = vcmp.lt.s32.totalorder %v156, 16
  %v159 = vsel %vm157, 1, 0
  %v160 = vsel %vm158, 1, 0
  %vm161 = vcmp.eq.s32.totalorder %v159, 1
  %vm162 = vcmp.eq.s32.totalorder %v160, 1
  %v163 = vsel %vm161, %v142, 0.0
  %v164 = vsel %vm162, %v145, 0.0
  %v165 = vadd.f32 %v163, %v164
  %v166 = vrot.slane %v165, 4
  %v167 = vadd.f32 %v165, %v166
  %v168 = vrot.slane %v167, 2
  %v169 = vadd.f32 %v167, %v168
  %v170 = vrot.slane %v169, 1
  %v171 = vadd.f32 %v169, %v170
  %s172 = ssub.s32 16, %s153
  %p173 = scmp.lt.s32.totalorder %s172, 16
  %s174 = scalar_select %p173, %s172, 16
  %p175 = scmp.gt.s32.totalorder %s174, 1
  %s176 = scalar_select %p175, %s174, 1
  %s177 = scvt.s32.f32 %s176
  %v178 = vstv %s177
  %v179 = vrcp.pop %v178
  %s180 = vtos %v179
  %v181 = vstv %s180
  %v182 = vmul.f32 %v171, %v181
  %v183 = vsub.f32 %v142, %v182
  %v184 = vsub.f32 %v145, %v182
  %v185 = vsel %vm161, %v183, 0.0
  %v186 = vsel %vm162, %v184, 0.0
  %v187 = vmul.f32 %v185, %v185
  %v188 = vmul.f32 %v186, %v186
  %v189 = vadd.f32 %v187, %v188
  %v190 = vrot.slane %v189, 4
  %v191 = vadd.f32 %v189, %v190
  %v192 = vrot.slane %v191, 2
  %v193 = vadd.f32 %v191, %v192
  %v194 = vrot.slane %v193, 1
  %v195 = vadd.f32 %v193, %v194
  %vm196 = vcmask 1040384
  %v197 = vsel %vm196, %v171, %v195
  %198 = vst [vmem:[%s5] sm:$0x3] %v197
  // Predicated region
  $region18: #{forward.4} parent=0 // pred_check
    _
  $region19: #{forward.4} parent=0 // pred_check_branch
    %200 = sbr.rel (0) target = $region21
  $region20: #{forward.4} parent=0 // pred_region
    _
  $region21: #{forward.4} parent=0 // pred_fallthru
    _
  // Predicated region
  $region22: #{forward.4} parent=0 // pred_check
    _
  $region23: #{forward.4} parent=0 // pred_check_branch
    %202 = sbr.rel (0) target = $region25
  $region24: #{forward.4} parent=0 // pred_region
    _
  $region25: #{forward.4} parent=0 // pred_fallthru
    _
  // Predicated region
  $region26: #{forward.4} parent=0 // pred_check
    _
  $region27: #{forward.4} parent=0 // pred_check_branch
    %204 = sbr.rel (0) target = $region29
  $region28: #{forward.4} parent=0 // pred_region
    _
  $region29: #{forward.4} parent=0 // pred_fallthru
    _
  // Predicated region
  $region30: #{forward.4} parent=0 // pred_check
    _
  $region31: #{forward.4} parent=0 // pred_check_branch
    %206 = sbr.rel (0) target = $region33
  $region32: #{forward.4} parent=0 // pred_region
    _
  $region33: #{forward.4} parent=0 // pred_fallthru
    _

// kernel: forward.3
$region0: #{forward.3}
  #allocation0 [shape = 'u32[]', space=smem, size = 0x4, offset = 0x4, fixed_abs, tag = 'smem constant byte address 0x4 - core index']
  #allocation1 [shape = 'u32[144,128]{1,0:T(1,128)}', space=vmem, size = 0x12000, scoped, tag = 'internal scratch']
  %s0 = inlined_call_operand.hbm [shape: f32[16,16], index: 0, kind: input, shape index: {}]
  %s1 = inlined_call_operand.hbm [shape: bf16[16,128], index: 1, kind: input, shape index: {}]
  %s2 = inlined_call_operand.vmem [shape: f32[16,128], index: 2, kind: output, shape index: {0}]
  %s3 = inlined_call_operand.vmem [shape: f32[1,2,128], index: 3, kind: output, shape index: {1}]
  %4 = xla_tuple %s2, %s3
  %s5 = sld [smem:[#allocation0]]
  $region34: #{forward.3} parent=0
    _
  %s7 = ssub.s32 1, %s5
  %s8 = scalar_select 0, %s7, %s5
  $region1: #{forward.3} parent=0
    #allocation2 [shape = 'u8[8192]{0}', space=vmem, size = 0x2000, scoped, tag = 'input window, operand 0, single buffered']
    #allocation3 [shape = 's32[1]{0}', space=sflag, size = 0x4, scoped, tag = 'scoped memory for forward.3']
    #allocation4 [shape = 'u8[4096]{0}', space=vmem, size = 0x1000, scoped, tag = 'input window, operand 1, single buffered']
    #allocation5 [shape = 's32[1]{0}', space=sflag, size = 0x4, scoped, tag = 'scoped memory for forward.3']
    %9 = vsyncpa [#allocation3], 0
    %10 = vsyncpa [#allocation5], 0
    // Predicated region
    $region2: #{forward.3} parent=1 // pred_check
      _
    $region3: #{forward.3} parent=1 // pred_check_branch
      %12 = sbr.rel (0) target = $region5
    $region4: #{forward.3} parent=1 // pred_region
      %s14 = ssub.s32 256, 256
      %15 = vsyncadd [#allocation3], %s14
      %s16 = sshll.u32 [#allocation2], 4
      %s17 = int_to_ptr.vmem [resolvable:$true] %s16
      %22 = dma.hbm_to_vmem [thread:$0]  %s0, 256, %s17, [#allocation3], 128, 128, 8
    $region5: #{forward.3} parent=1 // pred_fallthru
      _
    // Predicated region
    $region6: #{forward.3} parent=1 // pred_check
      _
    $region7: #{forward.3} parent=1 // pred_check_branch
      %24 = sbr.rel (0) target = $region9
    $region8: #{forward.3} parent=1 // pred_region
      %s26 = ssub.s32 128, 128
      %27 = vsyncadd [#allocation5], %s26
      %s28 = sshll.u32 [#allocation4], 4
      %s29 = int_to_ptr.vmem [resolvable:$true] %s28
      %34 = dma.hbm_to_vmem [thread:$0]  %s1, 128, %s29, [#allocation5], 64, 64, 4
    $region9: #{forward.3} parent=1 // pred_fallthru
      _
    // Predicated region
    $region10: #{forward.3} parent=1 // pred_check
      _
    $region11: #{forward.3} parent=1 // pred_check_branch
      %36 = sbr.rel (0) target = $region13
    $region12: #{forward.3} parent=1 // pred_region
      %37 = dma.done [#allocation3], 256
    $region13: #{forward.3} parent=1 // pred_fallthru
      _
    // Predicated region
    $region14: #{forward.3} parent=1 // pred_check
      _
    $region15: #{forward.3} parent=1 // pred_check_branch
      %39 = sbr.rel (0) target = $region17
    $region16: #{forward.3} parent=1 // pred_region
      %40 = dma.done [#allocation5], 128
    $region17: #{forward.3} parent=1 // pred_fallthru
      _
    %v42 = vld [vmem:[#allocation2] sm:$0xff]
    %v43 = vld [vmem:[#allocation2 + $0x8] sm:$0xff]
    %v44 = vpack.c.bf16 %v43, %v42
    %v45 = vld [vmem:[#allocation4] sm:$0xf]
    %v46 = vld [vmem:[#allocation4 + $0x4] sm:$0xf]
    %v49 = vunpack.c.l.b16 %v45
    %v50 = vunpack.c.l.b16 %v46
    %v51 = vpack.c.b16 %v50, %v49
    %vm53 = vcmask 130048
    %v55 = vsel %vm53, %v44, 0
    %57 = vmatprep.subr.bf16.mxu0 0
    %58 = vmatpush1.bf16.msra.mxu0 %v51
    %59 = vmatprep.subr.bf16.mxu0 0
    %60 = vmatpush1.bf16.msra.mxu0 0
    %61 = vmatprep.subr.bf16.mxu0 0
    %62 = vmatpush1.bf16.msra.mxu0 0
    %63 = vmatprep.subr.bf16.mxu0 0
    %64 = vmatpush1.bf16.msra.mxu0 0
    %65 = vmatprep.subr.bf16.mxu0 0
    %66 = vmatpush1.bf16.msra.mxu0 0
    %67 = vmatprep.subr.bf16.mxu0 0
    %68 = vmatpush1.bf16.msra.mxu0 0
    %69 = vmatprep.subr.bf16.mxu0 0
    %70 = vmatpush1.bf16.msra.mxu0 0
    %71 = vmatprep.subr.bf16.mxu0 0
    %72 = vmatpush1.bf16.msra.mxu0 0
    %73 = vmatprep.subr.bf16.mxu0 0
    %74 = vmatpush1.bf16.msra.mxu0 0
    %75 = vmatprep.subr.bf16.mxu0 0
    %76 = vmatpush1.bf16.msra.mxu0 0
    %77 = vmatprep.subr.bf16.mxu0 0
    %78 = vmatpush1.bf16.msra.mxu0 0
    %79 = vmatprep.subr.bf16.mxu0 0
    %80 = vmatpush1.bf16.msra.mxu0 0
    %81 = vmatprep.subr.bf16.mxu0 0
    %82 = vmatpush1.bf16.msra.mxu0 0
    %83 = vmatprep.subr.bf16.mxu0 0
    %84 = vmatpush1.bf16.msra.mxu0 0
    %85 = vmatprep.subr.bf16.mxu0 0
    %86 = vmatpush1.bf16.msra.mxu0 0
    %87 = vmatprep.subr.bf16.mxu0 0
    %88 = vmatpush1.bf16.msra.mxu0 0
    %89 = vmatprep.mubr.bf16.mxu0 0
    %90 = vmatmul.mubr.bf16.gmra.mrb[0].mxu0 %v55
    %v91 = vpop.f32.mrb[0].mxu0
    %v92 = vadd.f32 0.0, %v91
    %v93 = vpop.f32.mrb[0].mxu0
    %v94 = vpop.f32.mrb[0].mxu0
    %v95 = vadd.f32 0.0, %v94
    %v96 = vpop.f32.mrb[0].mxu0
    %97 = vdwg.mxu0
    %98 = vst [vmem:[%s2] sm:$0xff] %v92
    %99 = vst [vmem:[%s2 + $0x8] sm:$0xff] %v95
    %v100 = vlaneseq
    %v101 = vshrl.u32 %v100, 7
    %v102 = vadd.s32 %v101, 8
    %s103 = smul.u32 0, 16
    %v104 = vstv %s103
    %v105 = vadd.s32 %v101, %v104
    %v106 = vadd.s32 %v102, %v104
    %vm107 = vcmp.lt.s32.totalorder %v105, 16
    %vm108 = vcmp.lt.s32.totalorder %v106, 16
    %v109 = vsel %vm107, 1, 0
    %v110 = vsel %vm108, 1, 0
    %vm111 = vcmp.eq.s32.totalorder %v109, 1
    %vm112 = vcmp.eq.s32.totalorder %v110, 1
    %v113 = vsel %vm111, %v92, 0.0
    %v114 = vsel %vm112, %v95, 0.0
    %v115 = vadd.f32 %v113, %v114
    %v116 = vrot.slane %v115, 4
    %v117 = vadd.f32 %v115, %v116
    %v118 = vrot.slane %v117, 2
    %v119 = vadd.f32 %v117, %v118
    %v120 = vrot.slane %v119, 1
    %v121 = vadd.f32 %v119, %v120
    %s122 = ssub.s32 16, %s103
    %p123 = scmp.lt.s32.totalorder %s122, 16
    %s124 = scalar_select %p123, %s122, 16
    %p125 = scmp.gt.s32.totalorder %s124, 1
    %s126 = scalar_select %p125, %s124, 1
    %s127 = scvt.s32.f32 %s126
    %v128 = vstv %s127
    %v129 = vrcp.pop %v128
    %s130 = vtos %v129
    %v131 = vstv %s130
    %v132 = vmul.f32 %v121, %v131
    %v133 = vsub.f32 %v92, %v132
    %v134 = vsub.f32 %v95, %v132
    %v135 = vsel %vm111, %v133, 0.0
    %v136 = vsel %vm112, %v134, 0.0
    %v137 = vmul.f32 %v135, %v135
    %v138 = vmul.f32 %v136, %v136
    %v139 = vadd.f32 %v137, %v138
    %v140 = vrot.slane %v139, 4
    %v141 = vadd.f32 %v139, %v140
    %v142 = vrot.slane %v141, 2
    %v143 = vadd.f32 %v141, %v142
    %v144 = vrot.slane %v143, 1
    %v145 = vadd.f32 %v143, %v144
    %vm146 = vcmask 1040384
    %v147 = vsel %vm146, %v121, %v145
    %148 = vst [vmem:[%s3] sm:$0x3] %v147
    // Predicated region
    $region18: #{forward.3} parent=1 // pred_check
      _
    $region19: #{forward.3} parent=1 // pred_check_branch
      %150 = sbr.rel (0) target = $region21
    $region20: #{forward.3} parent=1 // pred_region
      _
    $region21: #{forward.3} parent=1 // pred_fallthru
      _
    // Predicated region
    $region22: #{forward.3} parent=1 // pred_check
      _
    $region23: #{forward.3} parent=1 // pred_check_branch
      %152 = sbr.rel (0) target = $region25
    $region24: #{forward.3} parent=1 // pred_region
      _
    $region25: #{forward.3} parent=1 // pred_fallthru
      _
    // Predicated region
    $region26: #{forward.3} parent=1 // pred_check
      _
    $region27: #{forward.3} parent=1 // pred_check_branch
      %154 = sbr.rel (0) target = $region29
    $region28: #{forward.3} parent=1 // pred_region
      _
    $region29: #{forward.3} parent=1 // pred_fallthru
      _
    // Predicated region
    $region30: #{forward.3} parent=1 // pred_check
      _
    $region31: #{forward.3} parent=1 // pred_check_branch
      %156 = sbr.rel (0) target = $region33
    $region32: #{forward.3} parent=1 // pred_region
      _
    $region33: #{forward.3} parent=1 // pred_fallthru
      _
    %157 = vsyncpa [#allocation3], 1
    %158 = vsyncpa [#allocation5], 1

</llo_original>
